<compile_context>
chip_gen: v5e
topology: v5e:2x2
jax: 0.10.0
libtpu: 0.0.40
codegen_flags: <defaults>
</compile_context>

<pallas_src>
import functools

import jax
import jax.numpy as jnp
from jax import lax
from jax.experimental import pallas as pl
from jax.experimental.pallas import tpu as pltpu

# ---------------- Config (small, consistent with the module) ----------------
VOCAB_SIZE = 1024          # small in-script vocab (kernel does not depend on it fitting VMEM)
HIDDEN = 768               # ModernBERT hidden size (multiple of 128 -> lane dense)
EPS = 1e-5
PAD_TOKEN_ID = 0


# ------------- Fused DMA-row-gather + LayerNorm (no affine) kernel ----------
def _embed_ln_kernel(ids_ref, emb_hbm, o_ref, x_ref, sem, *, tm, vocab, eps):
    # ids_ref : SMEM (T_pad,) int32   -- all token ids (scalar-prefetched)
    # emb_hbm : ANY  (V, H)           -- embedding table, stays in HBM
    # o_ref   : VMEM (TM, H)          -- output tile (auto-pipelined)
    # x_ref   : VMEM (TM, H) scratch  -- gather destination
    # sem     : DMA semaphore array (1,)
    base = pl.program_id(0) * tm

    # 1) Row gather: one async copy per token, HBM table -> VMEM scratch.
    @pl.loop(0, tm)
    def _issue(r):
        tok = ids_ref[base + r]
        tok = jnp.minimum(jnp.maximum(tok, 0), vocab - 1)   # never DMA out of bounds
        pltpu.make_async_copy(
            emb_hbm.at[pl.ds(tok, 1)], x_ref.at[pl.ds(r, 1)], sem.at[0]
        ).start()

    # 2) Wait for all `tm` row copies (same semaphore, identical copy sizes).
    @pl.loop(0, tm)
    def _wait(r):
        pltpu.make_async_copy(
            emb_hbm.at[pl.ds(0, 1)], x_ref.at[pl.ds(r, 1)], sem.at[0]
        ).wait()

    # 3) LayerNorm, elementwise_affine=False, single-pass statistics (f32).
    x = x_ref[...].astype(jnp.float32)
    inv_h = 1.0 / x.shape[-1]
    mean = jnp.sum(x, axis=-1, keepdims=True) * inv_h
    ex2 = jnp.sum(x * x, axis=-1, keepdims=True) * inv_h
    var = jnp.maximum(ex2 - mean * mean, 0.0)                # guard tiny cancellation
    o_ref[...] = ((x - mean) * lax.rsqrt(var + eps)).astype(o_ref.dtype)
    # Dropout(p=0.0) is the identity -> nothing to emit.


def _choose_tm(t, tm_max=512):
    """Token-tile rows: multiple of 8, <= tm_max, and grid >= 2 steps when possible."""
    if t <= 8:
        return t                                  # single block == full dim (legal)
    half = ((pl.cdiv(t, 2) + 7) // 8) * 8         # aim for >= 2 grid steps (v7x megacore)
    return min(tm_max, half)


def modern_bert_embeddings(tok_emb, input_ids, *, eps=EPS, out_dtype=None):
    """tok_emb: (vocab, hidden), input_ids: (B, S) int -> (B, S, hidden)."""
    B, S = input_ids.shape
    T = B * S
    V, H = tok_emb.shape
    out_dtype = tok_emb.dtype if out_dtype is None else jnp.dtype(out_dtype)

    ids = input_ids.reshape(T).astype(jnp.int32)

    TM = _choose_tm(T)
    num_tiles = pl.cdiv(T, TM)
    T_pad = num_tiles * TM
    if T_pad != T:
        # Pad ONLY the tiny id vector (4 B/token); the (T, H) output is never
        # padded or sliced -- the trailing partial tile is store-masked.
        ids = jnp.pad(ids, (0, T_pad - T))

    out = pl.pallas_call(
        functools.partial(_embed_ln_kernel, tm=TM, vocab=V, eps=eps),
        out_shape=jax.ShapeDtypeStruct((T, H), out_dtype),
        grid_spec=pltpu.PrefetchScalarGridSpec(
            num_scalar_prefetch=1,                       # ids -> SMEM
            grid=(num_tiles,),
            in_specs=[pl.BlockSpec(memory_space=pl.ANY)],  # table stays in HBM
            out_specs=pl.BlockSpec((TM, H), lambda i, ids: (i, 0)),
            scratch_shapes=[
                pltpu.VMEM((TM, H), tok_emb.dtype),      # gather destination
                pltpu.SemaphoreType.DMA((1,)),
            ],
        ),
        compiler_params=pltpu.CompilerParams(
            dimension_semantics=("parallel",),           # shards tiles across v7x TCs
            vmem_limit_bytes=32 * 1024 * 1024,           # explicit: >= every gen's default
        ),
    )(ids, tok_emb)

    return out.reshape(B, S, H)


# ---------------- Pure-JAX reference (for correctness check) ----------------
def _reference(tok_emb, input_ids, eps=EPS):
    x = jnp.take(tok_emb, input_ids, axis=0).astype(jnp.float32)
    mean = jnp.mean(x, axis=-1, keepdims=True)
    var = jnp.mean(jnp.square(x - mean), axis=-1, keepdims=True)
    return (x - mean) * lax.rsqrt(var + eps)


if __name__ == "__main__":
    key = jax.random.PRNGKey(0)
    pkey, ikey, jkey = jax.random.split(key, 3)

    tok_emb = jax.random.normal(pkey, (VOCAB_SIZE, HIDDEN), jnp.float32) * 0.02
    tok_emb = tok_emb.at[PAD_TOKEN_ID].set(0.0)     # padding_idx row zeroed at init

    # Case 1: B*S divisible by the tile, f32 output.
    B, S = 2, 8
    input_ids = jax.random.randint(ikey, (B, S), 0, VOCAB_SIZE, dtype=jnp.int32)

    fwd_f32 = jax.jit(modern_bert_embeddings)
    out = fwd_f32(tok_emb, input_ids)
    jax.block_until_ready(out)
    assert out.shape == (B, S, HIDDEN) and out.dtype == jnp.float32
    ref = _reference(tok_emb, input_ids)
    assert jnp.allclose(out, ref, rtol=2e-4, atol=1e-5), "mismatch vs reference (f32)"

    # Case 2: uneven token count -> padded ids + masked partial trailing tile.
    B2, S2 = 3, 7
    input_ids2 = jax.random.randint(jkey, (B2, S2), 0, VOCAB_SIZE, dtype=jnp.int32)
    out2 = fwd_f32(tok_emb, input_ids2)
    jax.block_until_ready(out2)
    ref2 = _reference(tok_emb, input_ids2)
    assert out2.shape == (B2, S2, HIDDEN)
    assert jnp.allclose(out2, ref2, rtol=2e-4, atol=1e-5), "mismatch vs reference (uneven T)"

    # Case 3: bf16 output (halves the HBM write traffic the kernel is bound by).
    fwd_bf16 = jax.jit(functools.partial(modern_bert_embeddings, out_dtype=jnp.bfloat16))
    out_bf16 = fwd_bf16(tok_emb, input_ids)
    jax.block_until_ready(out_bf16)
    assert out_bf16.dtype == jnp.bfloat16
    assert jnp.allclose(out_bf16.astype(jnp.float32), ref, rtol=2e-2, atol=2e-2), \
        "mismatch vs reference (bf16 out)"

    print("KERNEL_OK")
</pallas_src>

<mosaic_0001>
module attributes {stable_mosaic.version = 11 : i64} {
  func.func @_embed_ln_kernel(%arg0: i32, %arg1: memref<16xi32, #tpu.memory_space<smem>>, %arg2: memref<1024x768xf32, #tpu.memory_space<any>>, %arg3: memref<8x768xf32, #tpu.memory_space<vmem>>, %arg4: memref<8x768xf32, #tpu.memory_space<vmem>>, %arg5: memref<1x!tpu.dma_semaphore, #tpu.memory_space<semaphore_mem>>) attributes {dimension_semantics = [#tpu.dimension_semantics<parallel>], iteration_bounds = array<i64: 2>, scalar_prefetch = 1 : i64, scratch_operands = 2 : i64, tpu.core_type = #tpu.core_type<tc>, window_params = [{}, {transform_indices = @transform_1, window_bounds = array<i64: 8, 768>}]} {
    %c8_i32 = arith.constant 8 : i32
    %0 = arith.muli %arg0, %c8_i32 : i32
    %c0_i32 = arith.constant 0 : i32
    %c8_i32_0 = arith.constant 8 : i32
    %1 = arith.addi %c0_i32, %c8_i32_0 : i32
    %c1_i32 = arith.constant 1 : i32
    scf.for %arg6 = %c0_i32 to %1 step %c1_i32  : i32 {
      %c1_i32_14 = arith.constant 1 : i32
      %25 = arith.muli %arg6, %c1_i32_14 : i32
      %c0_i32_15 = arith.constant 0 : i32
      %26 = arith.addi %c0_i32_15, %25 : i32
      %27 = arith.addi %0, %26 : i32
      %28 = arith.index_cast %27 : i32 to index
      %29 = memref.load %arg1[%28] : memref<16xi32, #tpu.memory_space<smem>>
      %c0_i32_16 = arith.constant 0 : i32
      %30 = arith.maxsi %29, %c0_i32_16 : i32
      %c1023_i32 = arith.constant 1023 : i32
      %31 = arith.minsi %30, %c1023_i32 : i32
      %c0_i32_17 = arith.constant 0 : i32
      %c0_i32_18 = arith.constant 0 : i32
      %32 = tpu.memref_slice %arg2[%31, %c0_i32_18] : memref<1024x768xf32, #tpu.memory_space<any>> -> memref<1x768xf32, #tpu.memory_space<any>>
      %c0_i32_19 = arith.constant 0 : i32
      %33 = tpu.memref_slice %arg4[%26, %c0_i32_19] : memref<8x768xf32, #tpu.memory_space<vmem>> -> memref<1x768xf32, #tpu.memory_space<vmem>>
      %34 = tpu.memref_slice %arg5[%c0_i32_17] : memref<1x!tpu.dma_semaphore, #tpu.memory_space<semaphore_mem>> -> memref<1x!tpu.dma_semaphore, #tpu.memory_space<semaphore_mem>>
      %35 = tpu.memref_squeeze %34 : memref<1x!tpu.dma_semaphore, #tpu.memory_space<semaphore_mem>> -> memref<!tpu.dma_semaphore, #tpu.memory_space<semaphore_mem>>
      tpu.enqueue_dma source(%32 : memref<1x768xf32, #tpu.memory_space<any>>) target(%33 : memref<1x768xf32, #tpu.memory_space<vmem>>) target_semaphore(%35 : memref<!tpu.dma_semaphore, #tpu.memory_space<semaphore_mem>>)
    }
    %c8_i32_1 = arith.constant 8 : i32
    %c0_i32_2 = arith.constant 0 : i32
    %c8_i32_3 = arith.constant 8 : i32
    %2 = arith.addi %c0_i32_2, %c8_i32_3 : i32
    %c1_i32_4 = arith.constant 1 : i32
    scf.for %arg6 = %c0_i32_2 to %2 step %c1_i32_4  : i32 {
      %c1_i32_14 = arith.constant 1 : i32
      %25 = arith.muli %arg6, %c1_i32_14 : i32
      %c0_i32_15 = arith.constant 0 : i32
      %26 = arith.addi %c0_i32_15, %25 : i32
      %c0_i32_16 = arith.constant 0 : i32
      %c0_i32_17 = arith.constant 0 : i32
      %c0_i32_18 = arith.constant 0 : i32
      %27 = tpu.memref_slice %arg2[%c0_i32_17, %c0_i32_18] : memref<1024x768xf32, #tpu.memory_space<any>> -> memref<1x768xf32, #tpu.memory_space<any>>
      %c0_i32_19 = arith.constant 0 : i32
      %28 = tpu.memref_slice %arg4[%26, %c0_i32_19] : memref<8x768xf32, #tpu.memory_space<vmem>> -> memref<1x768xf32, #tpu.memory_space<vmem>>
      %29 = tpu.memref_slice %arg5[%c0_i32_16] : memref<1x!tpu.dma_semaphore, #tpu.memory_space<semaphore_mem>> -> memref<1x!tpu.dma_semaphore, #tpu.memory_space<semaphore_mem>>
      %30 = tpu.memref_squeeze %29 : memref<1x!tpu.dma_semaphore, #tpu.memory_space<semaphore_mem>> -> memref<!tpu.dma_semaphore, #tpu.memory_space<semaphore_mem>>
      tpu.wait_dma2 semaphore(%30 : memref<!tpu.dma_semaphore, #tpu.memory_space<semaphore_mem>>) src(%27 : memref<1x768xf32, #tpu.memory_space<any>>) dst(%28 : memref<1x768xf32, #tpu.memory_space<vmem>>)
    }
    %c8_i32_5 = arith.constant 8 : i32
    %c0 = arith.constant 0 : index
    %c0_6 = arith.constant 0 : index
    %3 = vector.load %arg4[%c0, %c0_6] : memref<8x768xf32, #tpu.memory_space<vmem>>, vector<8x768xf32>
    %cst = arith.constant dense<0.000000e+00> : vector<8xf32>
    %4 = vector.multi_reduction <add>, %3, %cst [1] : vector<8x768xf32> to vector<8xf32>
    %5 = vector.shape_cast %4 : vector<8xf32> to vector<8x1xf32>
    %cst_7 = arith.constant 0.00130208337 : f32
    %6 = vector.broadcast %cst_7 : f32 to vector<8x1xf32>
    %7 = arith.mulf %5, %6 : vector<8x1xf32>
    %8 = arith.mulf %3, %3 : vector<8x768xf32>
    %cst_8 = arith.constant dense<0.000000e+00> : vector<8xf32>
    %9 = vector.multi_reduction <add>, %8, %cst_8 [1] : vector<8x768xf32> to vector<8xf32>
    %10 = vector.shape_cast %9 : vector<8xf32> to vector<8x1xf32>
    %cst_9 = arith.constant 0.00130208337 : f32
    %11 = vector.broadcast %cst_9 : f32 to vector<8x1xf32>
    %12 = arith.mulf %10, %11 : vector<8x1xf32>
    %13 = arith.mulf %7, %7 : vector<8x1xf32>
    %14 = arith.subf %12, %13 : vector<8x1xf32>
    %cst_10 = arith.constant 0.000000e+00 : f32
    %15 = vector.broadcast %cst_10 : f32 to vector<8x1xf32>
    %16 = arith.maximumf %14, %15 : vector<8x1xf32>
    %17 = vector.broadcast %7 : vector<8x1xf32> to vector<8x768xf32>
    %18 = arith.subf %3, %17 : vector<8x768xf32>
    %cst_11 = arith.constant 9.99999974E-6 : f32
    %19 = vector.broadcast %cst_11 : f32 to vector<8x1xf32>
    %20 = arith.addf %16, %19 : vector<8x1xf32>
    %21 = math.rsqrt %20 : vector<8x1xf32>
    %22 = vector.broadcast %21 : vector<8x1xf32> to vector<8x768xf32>
    %23 = arith.mulf %18, %22 : vector<8x768xf32>
    %c0_12 = arith.constant 0 : index
    %c0_13 = arith.constant 0 : index
    %24 = vector.load %arg3[%c0_12, %c0_13] : memref<8x768xf32, #tpu.memory_space<vmem>>, vector<8x768xf32>
    tpu.vector_store %arg3[%c0_12, %c0_13], %23 {strides = array<i32>} : memref<8x768xf32, #tpu.memory_space<vmem>>, vector<8x768xf32>,
    return
  }
  func.func @transform_1(%arg0: i32, %arg1: memref<16xi32, #tpu.memory_space<smem>>) -> (i32, i32) {
    %c0_i32 = arith.constant 0 : i32
    %c0_i32_0 = arith.constant 0 : i32
    return %arg0, %c0_i32 : i32, i32
  }
}

</mosaic_0001>

<llo_original>
// kernel: modern_bert_embeddings.1
$region0: #{modern_bert_embeddings.1}
  #allocation0 [shape = 'u32[]', space=smem, size = 0x4, offset = 0x4, fixed_abs, tag = 'smem constant byte address 0x4 - core index']
  #allocation1 [shape = 'u32[72,128]{1,0:T(1,128)}', space=vmem, size = 0x9000, scoped, tag = 'internal scratch']
  #allocation2 [shape = 'f32[8,768]{1,0:T(8,128)}', space=vmem, size = 0x6000, scoped, tag = 'scratch operand']
  #allocation3 [shape = 's32[1]{0}', space=sflag, size = 0x4, scoped, tag = 'scratch operand']
  #allocation4 [shape = 's32[1]{0}', space=sflag, size = 0x4, scoped, tag = 'scoped memory for modern_bert_embeddings.1']
  #allocation5 [shape = 'u8[512]{0}', space=smem, size = 0x200, scoped, tag = 'prefetched SMEM operand 0']
  #allocation8 [shape = 's32[]', space=sflag, size = 0x4, offset = 0, fixed_abs, tag = 'sflag constant byte address 0x0 - dummy sync flag']
  %s0 = inlined_call_operand.vmem [shape: s32[16], index: 0, kind: input, shape index: {}]
  %s1 = inlined_call_operand.hbm [shape: f32[1024,768], index: 1, kind: input, shape index: {}]
  %s2 = inlined_call_operand.hbm [shape: f32[16,768], index: 2, kind: output, shape index: {}]
  %s3 = sld [smem:[#allocation0]]
  $region39: #{modern_bert_embeddings.1} parent=0
    _
  %s5 = ssub.s32 1, %s3
  %s6 = scalar_select 0, %s5, %s3
  %s8 = sshll.u32 %s0, 4
  %s9 = int_to_ptr.vmem [resolvable:$true] %s8
  %11 = dma.vmem_to_smem %s9, 16, [#allocation5], [#allocation4]
  %13 = dma.done [#allocation4], 16
  %14 = sfence
  $region1: #{modern_bert_embeddings.1} parent=0
    #allocation6 [shape = 'u8[49152]{0}', space=vmem, size = 0xc000, scoped, tag = 'output window, operand 0']
    #allocation7 [shape = 's32[2]{0}', space=sflag, size = 0x8, scoped, tag = 'scoped memory for modern_bert_embeddings.1']
    %15 = vsyncpa [#allocation7], 0
    %s16 = scalar_lea.sflag [#allocation7], 1
    %17 = vsyncpa %s16, 0
    loop: start=0, step=1, limit=3
    $region2: #{modern_bert_embeddings.1} parent=1 // loop_pre_header
      _
    $region3: #{modern_bert_embeddings.1} parent=1 // loop_header
      %s19 = sphi 0, %s23
      %p20 = scmp.ge.s32.totalorder %s19, 3
      %s28 = sphi 0, %s30
      %s31 = sphi 0, %s28
      %s41 = sphi 0, %s31
    $region4: #{modern_bert_embeddings.1} parent=1 // loop_header_branch
      %22 = sbr.rel (%p20) target = $region8
    $region5: #{modern_bert_embeddings.1} parent=1 // loop_body
      %s24 = ssub.s32 %s19, 1
      %s25 = sadd.s32 %s19, 1
      %s26 = ssub.s32 %s19, %s25
      %p27 = scmp.eq.s32.totalorder %s26, 0
      %s29 = sadd.s32 %s28, 1
      %s30 = scalar_select %p27, %s28, %s29
      %p32 = pneg %p27
      %p33 = scmp.eq.s32.totalorder %s19, 1
      %p34 = por %p32, %p33
      %p35 = scmp.ne.s32.totalorder %s28, %s31
      %p36 = scmp.eq.s32.totalorder %s19, 0
      %p37 = por %p35, %p36
      %p38 = scmp.ne.s32.totalorder %s28, %s31
      %p39 = scmp.eq.s32.totalorder %s24, 1
      %p40 = por %p38, %p39
      %p42 = scmp.ne.s32.totalorder %s31, %s41
      %p43 = scmp.eq.s32.totalorder %s24, 0
      %p44 = por %p42, %p43
      %p45 = scmp.lt.s32.totalorder %s19, 2
      // Predicated region
      $region9: #{modern_bert_embeddings.1} parent=5 // pred_check
        %p46 = pneg %p45
      $region10: #{modern_bert_embeddings.1} parent=5 // pred_check_branch
        %48 = sbr.rel (%p46) target = $region12
      $region11: #{modern_bert_embeddings.1} parent=5 // pred_region
        %p49 = pneg %p37
        %p50 = pneg %p34
        %s51 = sand.u32 %s28, 1
        %s52 = scalar_lea.sflag [#allocation7], %s51
        %s53 = sand.u32 %s28, 1
        %s54 = smul.addr %s53, 48
        %s55 = scalar_lea.vmem [#allocation6], %s54
        %s56 = smul.u32 %s19, 8
        loop: start=0, step=1, limit=8
        $region13: #{modern_bert_embeddings.1} parent=11 // loop_pre_header
          _
        $region14: #{modern_bert_embeddings.1} parent=11 // loop_header
          %s58 = sphi 0, %s62
          %p59 = scmp.ge.s32.totalorder %s58, 8
        $region15: #{modern_bert_embeddings.1} parent=11 // loop_header_branch
          %61 = sbr.rel (%p59) target = $region19
        $region16: #{modern_bert_embeddings.1} parent=11 // loop_body
          %s63 = sadd.s32 %s56, %s58
          %s64 = sld [smem:[#allocation5 + %s63]]
          %p65 = scmp.gt.s32.totalorder %s64, 0
          %s66 = scalar_select %p65, %s64, 0
          %p67 = scmp.lt.s32.totalorder %s66, 1023
          %s68 = scalar_select %p67, %s66, 1023
          %s69 = sshrl.u32 %s68, 3
          %s70 = sand.u32 %s68, 7
          %s71 = smul.u32 %s69, 48
          %s72 = sadd.s32 %s70, %s71
          %s73 = scalar_lea.hbm %s1, %s72
          %s74 = sshrl.u32 %s58, 3
          %s75 = sand.u32 %s58, 7
          %s76 = smul.u32 %s74, 48
          %s77 = sadd.s32 %s75, %s76
          %s78 = scalar_lea.vmem [#allocation2], %s77
          %s79 = sshll.u32 %s73, 4
          %s80 = int_to_ptr.hbm [resolvable:$true] %s79
          %s81 = sshll.u32 %s78, 4
          %s82 = int_to_ptr.vmem [resolvable:$true] %s81
          %86 = dma.hbm_to_vmem [thread:$0]  %s80, 96, %s82, [#allocation3], 128, 128, 1
        $region17: #{modern_bert_embeddings.1} parent=11 // loop_footer
          %s62 = sadd.s32 1, %s58
        $region18: #{modern_bert_embeddings.1} parent=11 // loop_footer_branch
          %57 = sbr.rel target = $region14
        $region19: #{modern_bert_embeddings.1} parent=11 // loop_exit
          _
        loop: start=0, step=1, limit=8
        $region20: #{modern_bert_embeddings.1} parent=11 // loop_pre_header
          _
        $region21: #{modern_bert_embeddings.1} parent=11 // loop_header
          %s88 = sphi 0, %s92
          %p89 = scmp.ge.s32.totalorder %s88, 8
        $region22: #{modern_bert_embeddings.1} parent=11 // loop_header_branch
          %91 = sbr.rel (%p89) target = $region26
        $region23: #{modern_bert_embeddings.1} parent=11 // loop_body
          %s93 = smul.u32 1, 6
          %s94 = sshll.u32 %s93, 4
          %95 = dma.done [#allocation3], %s94
        $region24: #{modern_bert_embeddings.1} parent=11 // loop_footer
          %s92 = sadd.s32 1, %s88
        $region25: #{modern_bert_embeddings.1} parent=11 // loop_footer_branch
          %87 = sbr.rel target = $region21
        $region26: #{modern_bert_embeddings.1} parent=11 // loop_exit
          _
        %v96 = vld [vmem:[#allocation2] sm:$0xff]
        %v97 = vld [vmem:[#allocation2 + $0x8] sm:$0xff]
        %v98 = vld [vmem:[#allocation2 + $0x10] sm:$0xff]
        %v99 = vld [vmem:[#allocation2 + $0x18] sm:$0xff]
        %v100 = vld [vmem:[#allocation2 + $0x20] sm:$0xff]
        %v101 = vld [vmem:[#allocation2 + $0x28] sm:$0xff]
        %v102 = vadd.f32 %v96, %v97
        %v103 = vadd.f32 %v102, %v98
        %v104 = vadd.f32 %v103, %v99
        %v105 = vadd.f32 %v104, %v100
        %v106 = vadd.f32 %v105, %v101
        %107 = vadd.xlane.f32.xlu0 %v106
        %v108 = vpop.xlane.xlu0 %107
        %v109 = vmul.f32 %v108, 0.0013020834
        %v110 = vmul.f32 %v96, %v96
        %v111 = vmul.f32 %v97, %v97
        %v112 = vmul.f32 %v98, %v98
        %v113 = vmul.f32 %v99, %v99
        %v114 = vmul.f32 %v100, %v100
        %v115 = vmul.f32 %v101, %v101
        %v116 = vadd.f32 %v110, %v111
        %v117 = vadd.f32 %v116, %v112
        %v118 = vadd.f32 %v117, %v113
        %v119 = vadd.f32 %v118, %v114
        %v120 = vadd.f32 %v119, %v115
        %121 = vadd.xlane.f32.xlu0 %v120
        %v122 = vpop.xlane.xlu0 %121
        %v123 = vmul.f32 %v122, 0.0013020834
        %v124 = vmul.f32 %v109, %v109
        %v125 = vsub.f32 %v123, %v124
        %v126 = vmax.f32 %v125, 0.0
        %v127 = vsub.f32 %v96, %v109
        %v128 = vsub.f32 %v97, %v109
        %v129 = vsub.f32 %v98, %v109
        %v130 = vsub.f32 %v99, %v109
        %v131 = vsub.f32 %v100, %v109
        %v132 = vsub.f32 %v101, %v109
        %v133 = vadd.f32 %v126, 1e-05
        %v134 = vrsqrt.pop %v133
        %v135 = vmul.f32 %v134, %v133
        %v136 = vmul.f32 %v135, %v134
        %v137 = vmul.f32 0.5, %v136
        %v138 = vsub.f32 1.5, %v137
        %v139 = vmul.f32 %v134, %v138
        %vm140 = vweird.f32 %v133
        %vm141 = vweird.f32 %v134
        %vm142 = vmor %vm140, %vm141
        %v143 = vsel %vm142, %v134, %v139
        %v144 = vmul.f32 %v127, %v143
        %v145 = vmul.f32 %v128, %v143
        %v146 = vmul.f32 %v129, %v143
        %v147 = vmul.f32 %v130, %v143
        %v148 = vmul.f32 %v131, %v143
        %v149 = vmul.f32 %v132, %v143
        %150 = vst [vmem:[%s55] sm:$0xff] %v144
        %151 = vst [vmem:[%s55 + $0x8] sm:$0xff] %v145
        %152 = vst [vmem:[%s55 + $0x10] sm:$0xff] %v146
        %153 = vst [vmem:[%s55 + $0x18] sm:$0xff] %v147
        %154 = vst [vmem:[%s55 + $0x20] sm:$0xff] %v148
        %155 = vst [vmem:[%s55 + $0x28] sm:$0xff] %v149
        %s156 = sand.u32 %s28, 1
        %s157 = scalar_lea.sflag [#allocation7], %s156
        %s158 = sand.u32 %s28, 1
        %s159 = smul.addr %s158, 48
        %s160 = scalar_lea.vmem [#allocation6], %s159
        // Predicated region
        $region27: #{modern_bert_embeddings.1} parent=11 // pred_check
          %p161 = pneg %p34
        $region28: #{modern_bert_embeddings.1} parent=11 // pred_check_branch
          %163 = sbr.rel (%p161) target = $region30
        $region29: #{modern_bert_embeddings.1} parent=11 // pred_region
          %165 = vsyncadd %s157, 0
          %s166 = smul.addr %s19, 6
          %s167 = smul.addr %s166, 8
          %s168 = scalar_lea.hbm %s2, %s167
          %s170 = sshll.u32 %s160, 4
          %s171 = int_to_ptr.vmem [resolvable:$true] %s170
          %s172 = sshll.u32 %s168, 4
          %s173 = int_to_ptr.hbm [resolvable:$true] %s172
          %175 = dma.vmem_to_hbm [thread:$0]  %s171, 768, %s173, %s157
        $region30: #{modern_bert_embeddings.1} parent=11 // pred_fallthru
          _
      $region12: #{modern_bert_embeddings.1} parent=5 // pred_fallthru
        _
      %p176 = scmp.le.s32.totalorder 1, %s19
      // Predicated region
      $region31: #{modern_bert_embeddings.1} parent=5 // pred_check
        %p177 = pneg %p176
      $region32: #{modern_bert_embeddings.1} parent=5 // pred_check_branch
        %179 = sbr.rel (%p177) target = $region34
      $region33: #{modern_bert_embeddings.1} parent=5 // pred_region
        %s180 = ssub.s32 %s19, 1
        // Predicated region
        $region35: #{modern_bert_embeddings.1} parent=33 // pred_check
          %p181 = pneg %p40
        $region36: #{modern_bert_embeddings.1} parent=33 // pred_check_branch
          %183 = sbr.rel (%p181) target = $region38
        $region37: #{modern_bert_embeddings.1} parent=33 // pred_region
          %s184 = sand.u32 %s31, 1
          %s185 = scalar_lea.sflag [#allocation7], %s184
          %s186 = sand.u32 %s31, 1
          %s187 = smul.addr %s186, 48
          %s188 = scalar_lea.vmem [#allocation6], %s187
          %190 = dma.done %s185, 768
        $region38: #{modern_bert_embeddings.1} parent=33 // pred_fallthru
          _
      $region34: #{modern_bert_embeddings.1} parent=5 // pred_fallthru
        _
    $region6: #{modern_bert_embeddings.1} parent=1 // loop_footer
      %s23 = sadd.s32 1, %s19
    $region7: #{modern_bert_embeddings.1} parent=1 // loop_footer_branch
      %18 = sbr.rel target = $region3
    $region8: #{modern_bert_embeddings.1} parent=1 // loop_exit
      _
    %191 = vsyncpa [#allocation7], 1
    %s192 = scalar_lea.sflag [#allocation7], 1
    %193 = vsyncpa %s192, 1
  %194 = vsyncmov [#allocation3]
  %s195 = vpop.sfrf %194
  %p196 = scmp.eq.s32.totalorder %s195, 0
  %p197 = pneg %p196
  %199 = shalt.err (%p197)

</llo_original>
